<compile_context>
chip_gen: v7x
topology: tpu7x:2x2x1
jax: 0.10.0
libtpu: 0.0.40
codegen_flags: <defaults>
</compile_context>

<pallas_src>
import functools
import math

import jax
import jax.numpy as jnp
from jax import lax
from jax.experimental import pallas as pl
from jax.experimental.pallas import tpu as pltpu

LANES = 128
SUBLANES = 8
MAX_BLOCK_ROWS = 4096            # 4096 * 128 * 4 B = 2 MiB per f32 input block
VMEM_LIMIT = 32 * 1024 * 1024    # explicit scoped-VMEM budget (safe on v5e/v6e/v7x)


# ---------------------------------------------------------------------------
# Kernels
# ---------------------------------------------------------------------------
def _hinge_none_kernel(out_ref, tgt_ref, loss_ref):
    # elementwise relu(1 - t*o); compute in f32, store in the output dtype
    o = out_ref[...].astype(jnp.float32)
    t = tgt_ref[...].astype(jnp.float32)
    loss_ref[...] = jnp.maximum(1.0 - t * o, 0.0).astype(loss_ref.dtype)


def _hinge_reduce_kernel(out_ref, tgt_ref, sum_ref, acc_ref, *,
                         total_rows, block_rows):
    # Fused hinge + sum over the whole (total_rows, 128) slab.
    #   sum_ref: SMEM (1,1) f32 result
    #   acc_ref: VMEM (8,128) f32 running partial sums (one vreg)
    i = pl.program_id(0)
    o = out_ref[...].astype(jnp.float32)
    t = tgt_ref[...].astype(jnp.float32)
    loss = jnp.maximum(1.0 - t * o, 0.0)

    if total_rows % block_rows != 0:
        # last grid block is partial: mask garbage rows read past the array end
        row_ids = i * block_rows + lax.broadcasted_iota(jnp.int32, loss.shape, 0)
        loss = jnp.where(row_ids < total_rows, loss, 0.0)

    if block_rows % SUBLANES == 0:
        @pl.when(i == 0)
        def _():
            acc_ref[...] = jnp.zeros_like(acc_ref)

        # vreg-wise partial sums: pure VALU adds, no per-step XLU reduce and no
        # per-step SMEM scalar round trip (hides completely under the DMA)
        acc_ref[...] += loss.reshape(block_rows // SUBLANES, SUBLANES, LANES).sum(axis=0)

        @pl.when(i == pl.num_programs(0) - 1)
        def _():
            sum_ref[0, 0] = jnp.sum(acc_ref[...])
    else:
        # tiny single-block case (block equals the full array, grid == 1)
        sum_ref[0, 0] = jnp.sum(loss)


# ---------------------------------------------------------------------------
# Fused, jitted forward
# ---------------------------------------------------------------------------
def _tile_params(rows):
    if rows <= MAX_BLOCK_ROWS:
        return rows, 1                      # single block == full array
    return MAX_BLOCK_ROWS, pl.cdiv(rows, MAX_BLOCK_ROWS)


@functools.partial(jax.jit, static_argnames=("reduction", "is_soft", "C"))
def _hinge_forward(output, target, weights, *, reduction, is_soft, C):
    if is_soft and weights is None:
        raise ValueError("Weight must be provided for soft-margin classification!")

    out_sq = jnp.squeeze(output)
    bshape = jnp.broadcast_shapes(jnp.shape(target), jnp.shape(out_sq))
    n = max(int(math.prod(bshape)), 1)

    res_dtype = jnp.result_type(output.dtype, target.dtype)
    if not jnp.issubdtype(res_dtype, jnp.floating):
        res_dtype = jnp.float32

    out_flat = jnp.broadcast_to(out_sq, bshape).reshape(-1)
    tgt_flat = jnp.broadcast_to(target, bshape).reshape(-1)

    # Only a sub-128 remainder ever gets padded (sentinels give zero hinge:
    # relu(1 - 1*2) = 0).  When n % 128 == 0 the reshape below is copy-free.
    pad = (-n) % LANES
    if pad:
        out_flat = jnp.pad(out_flat, (0, pad), constant_values=2)
        tgt_flat = jnp.pad(tgt_flat, (0, pad), constant_values=1)
    rows = (n + pad) // LANES
    out2d = out_flat.reshape(rows, LANES)
    tgt2d = tgt_flat.reshape(rows, LANES)

    block_rows, num_blocks = _tile_params(rows)
    grid = (num_blocks,)
    in_specs = [pl.BlockSpec((block_rows, LANES), lambda i: (i, 0)),
                pl.BlockSpec((block_rows, LANES), lambda i: (i, 0))]

    def _reg_and_dtype():
        reg = 0.5 * jnp.sum(jnp.square(weights.astype(jnp.float32)))
        total_dtype = jnp.result_type(res_dtype, weights.dtype)
        if not jnp.issubdtype(total_dtype, jnp.floating):
            total_dtype = jnp.float32
        return reg, total_dtype

    if reduction in ("mean", "sum"):
        kernel = functools.partial(_hinge_reduce_kernel,
                                   total_rows=rows, block_rows=block_rows)
        hinge_sum = pl.pallas_call(
            kernel,
            out_shape=jax.ShapeDtypeStruct((1, 1), jnp.float32),
            grid_spec=pltpu.PrefetchScalarGridSpec(
                num_scalar_prefetch=0,
                grid=grid,
                in_specs=in_specs,
                out_specs=pl.BlockSpec(memory_space=pltpu.SMEM),
                scratch_shapes=[pltpu.VMEM((SUBLANES, LANES), jnp.float32)],
            ),
            compiler_params=pltpu.CompilerParams(
                dimension_semantics=("arbitrary",),
                vmem_limit_bytes=VMEM_LIMIT),
        )(out2d, tgt2d)[0, 0]

        hinge = hinge_sum / n if reduction == "mean" else hinge_sum

        if is_soft:
            # tiny ||w||^2 + scalar epilogue: let XLA fuse it (kernel would be overhead)
            reg, total_dtype = _reg_and_dtype()
            return (reg + C * hinge).astype(total_dtype)
        return hinge.astype(res_dtype)

    # reduction == 'none' : tiled elementwise kernel, batch axis parallel
    loss2d = pl.pallas_call(
        _hinge_none_kernel,
        out_shape=jax.ShapeDtypeStruct((rows, LANES), res_dtype),
        grid_spec=pltpu.PrefetchScalarGridSpec(
            num_scalar_prefetch=0,
            grid=grid,
            in_specs=in_specs,
            out_specs=pl.BlockSpec((block_rows, LANES), lambda i: (i, 0)),
        ),
        compiler_params=pltpu.CompilerParams(
            dimension_semantics=("parallel",),
            vmem_limit_bytes=VMEM_LIMIT),
    )(out2d, tgt2d)

    loss_flat = loss2d.reshape(-1)
    if pad:
        loss_flat = loss_flat[:n]
    loss = loss_flat.reshape(bshape)

    if is_soft:
        reg, total_dtype = _reg_and_dtype()
        return (reg + C * loss.astype(jnp.float32)).astype(total_dtype)
    return loss


# ---------------------------------------------------------------------------
# Module-equivalent wrapper
# ---------------------------------------------------------------------------
class HingePallas:
    def __init__(self, reduction: str = "mean", is_soft: bool = False, C: float = 1.0):
        self.reduction = reduction
        self.is_soft = is_soft
        self.C = C

    def __repr__(self):
        return f"Hinge(reduction: {self.reduction}, is_soft: {self.is_soft}, C: {self.C})"

    def __call__(self, output, target, weights=None):
        if self.is_soft and weights is None:
            raise ValueError("Weight must be provided for soft-margin classification!")
        return _hinge_forward(output, target, weights,
                              reduction=self.reduction,
                              is_soft=self.is_soft,
                              C=float(self.C))


# ---------------------------------------------------------------------------
# Demo
# ---------------------------------------------------------------------------
if __name__ == "__main__":
    key = jax.random.PRNGKey(0)
    k1, k2, k3, k4, k5 = jax.random.split(key, 5)

    N = 256   # batch of SVM scores
    D = 32    # weight-vector size

    output = jax.random.normal(k1, (N, 1), dtype=jnp.float32)           # model scores
    target = jnp.sign(jax.random.normal(k2, (N,), dtype=jnp.float32))   # labels {-1,+1}
    target = jnp.where(target == 0, 1.0, target)
    weights = 0.1 * jax.random.normal(k3, (D,), dtype=jnp.float32)      # SVM weights

    hinge_mean = HingePallas(reduction="mean")(output, target, None)
    hinge_sum = HingePallas(reduction="sum")(output, target, None)
    hinge_soft = HingePallas(reduction="mean", is_soft=True, C=2.0)(output, target, weights)
    hinge_none = HingePallas(reduction="none")(output, target, None)
    jax.block_until_ready((hinge_mean, hinge_sum, hinge_soft, hinge_none))

    ref_loss = jnp.maximum(1.0 - target * jnp.squeeze(output), 0.0)
    assert jnp.allclose(hinge_mean, ref_loss.mean(), rtol=1e-5, atol=1e-5)
    assert jnp.allclose(hinge_sum, ref_loss.sum(), rtol=1e-5, atol=1e-5)
    assert jnp.allclose(
        hinge_soft, 0.5 * jnp.sum(weights ** 2) + 2.0 * ref_loss.mean(),
        rtol=1e-5, atol=1e-5)
    assert jnp.allclose(hinge_none, ref_loss, rtol=1e-5, atol=1e-5)

    # Multi-block grid + partial trailing block + unaligned (n % 128 != 0) tail
    N2 = MAX_BLOCK_ROWS * LANES + 5 * LANES + 37
    out2 = jax.random.normal(k4, (N2, 1), dtype=jnp.float32)
    tgt2 = jnp.sign(jax.random.normal(k5, (N2,), dtype=jnp.float32))
    tgt2 = jnp.where(tgt2 == 0, 1.0, tgt2)
    big_mean = HingePallas(reduction="mean")(out2, tgt2, None)
    big_none = HingePallas(reduction="none")(out2, tgt2, None)
    jax.block_until_ready((big_mean, big_none))
    ref2 = jnp.maximum(1.0 - tgt2 * jnp.squeeze(out2), 0.0)
    assert jnp.allclose(big_mean, ref2.mean(), rtol=1e-4, atol=1e-5)
    assert jnp.allclose(big_none, ref2, rtol=1e-5, atol=1e-5)

    # bf16 inputs: 'none' result keeps the input dtype (matches torch, halves writeback)
    none_bf = HingePallas(reduction="none")(output.astype(jnp.bfloat16),
                                            target.astype(jnp.bfloat16), None)
    jax.block_until_ready(none_bf)
    assert none_bf.dtype == jnp.bfloat16
    assert jnp.allclose(none_bf.astype(jnp.float32), ref_loss, rtol=2e-2, atol=3e-2)

    print("KERNEL_OK")
</pallas_src>

<mosaic_0001>
module attributes {stable_mosaic.version = 11 : i64} {
  func.func @_hinge_reduce_kernel(%arg0: i32, %arg1: memref<2x128xf32, #tpu.memory_space<vmem>>, %arg2: memref<2x128xf32, #tpu.memory_space<vmem>>, %arg3: memref<1x1xf32, #tpu.memory_space<smem>>, %arg4: memref<8x128xf32, #tpu.memory_space<vmem>>) attributes {dimension_semantics = [#tpu.dimension_semantics<arbitrary>], iteration_bounds = array<i64: 1>, scalar_prefetch = 0 : i64, scratch_operands = 1 : i64, tpu.core_type = #tpu.core_type<tc>, window_params = [{transform_indices = @transform_0, window_bounds = array<i64: 2, 128>}, {transform_indices = @transform_1, window_bounds = array<i64: 2, 128>}, {transform_indices = @transform_2, window_bounds = array<i64: 1, 1>}]} {
    %c0 = arith.constant 0 : index
    %c0_0 = arith.constant 0 : index
    %0 = vector.load %arg1[%c0, %c0_0] : memref<2x128xf32, #tpu.memory_space<vmem>>, vector<2x128xf32>
    %c0_1 = arith.constant 0 : index
    %c0_2 = arith.constant 0 : index
    %1 = vector.load %arg2[%c0_1, %c0_2] : memref<2x128xf32, #tpu.memory_space<vmem>>, vector<2x128xf32>
    %2 = arith.mulf %1, %0 : vector<2x128xf32>
    %cst = arith.constant 1.000000e+00 : f32
    %3 = vector.broadcast %cst : f32 to vector<2x128xf32>
    %4 = arith.subf %3, %2 : vector<2x128xf32>
    %cst_3 = arith.constant 0.000000e+00 : f32
    %5 = vector.broadcast %cst_3 : f32 to vector<2x128xf32>
    %6 = arith.maximumf %4, %5 : vector<2x128xf32>
    %7 = vector.shape_cast %6 : vector<2x128xf32> to vector<1x2x128xf32>
    %cst_4 = arith.constant dense<0.000000e+00> : vector<1xf32>
    %8 = vector.multi_reduction <add>, %7, %cst_4 [1, 2] : vector<1x2x128xf32> to vector<1xf32>
    %9 = vector.shape_cast %8 : vector<1xf32> to vector<1x1x1xf32>
    %10 = vector.extract %9[0, 0, 0] : f32 from vector<1x1x1xf32>
    %c0_5 = arith.constant 0 : index
    %c0_6 = arith.constant 0 : index
    %11 = memref.load %arg3[%c0_5, %c0_6] : memref<1x1xf32, #tpu.memory_space<smem>>
    memref.store %10, %arg3[%c0_5, %c0_6] : memref<1x1xf32, #tpu.memory_space<smem>>
    return
  }
  func.func @transform_0(%arg0: i32) -> (i32, i32) {
    %c0_i32 = arith.constant 0 : i32
    %c0_i32_0 = arith.constant 0 : i32
    return %arg0, %c0_i32 : i32, i32
  }
  func.func @transform_1(%arg0: i32) -> (i32, i32) {
    %c0_i32 = arith.constant 0 : i32
    %c0_i32_0 = arith.constant 0 : i32
    return %arg0, %c0_i32 : i32, i32
  }
  func.func @transform_2(%arg0: i32) -> (i32, i32) {
    %c0_i32 = arith.constant 0 : i32
    %c0_i32_0 = arith.constant 0 : i32
    %c0_i32_1 = arith.constant 0 : i32
    return %c0_i32, %c0_i32_0 : i32, i32
  }
}

</mosaic_0001>

<llo_original>
// kernel: _hinge_forward.1
$region0: #{_hinge_forward.1}
  #allocation0 [shape = 'u32[]', space=smem, size = 0x4, offset = 0x4, fixed_abs, tag = 'smem constant byte address 0x4 - core index']
  #allocation1 [shape = 'u32[144,128]{1,0:T(1,128)}', space=vmem, size = 0x12000, scoped, tag = 'internal scratch']
  #allocation2 [shape = 'f32[8,128]{1,0:T(8,128)}', space=vmem, size = 0x1000, scoped, tag = 'scratch operand']
  %s0 = inlined_call_operand.vmem [shape: f32[2,128], index: 0, kind: input, shape index: {}]
  %s1 = inlined_call_operand.vmem [shape: f32[2,128], index: 1, kind: input, shape index: {}]
  %s2 = inlined_call_operand.hbm [shape: f32[1,1], index: 2, kind: output, shape index: {}]
  %s3 = sld [smem:[#allocation0]]
  $region18: #{_hinge_forward.1} parent=0
    _
  %s5 = ssub.s32 1, %s3
  %s6 = scalar_select 0, %s5, %s3
  $region1: #{_hinge_forward.1} parent=0
    #allocation3 [shape = 'u8[512]{0}', space=smem, size = 0x200, scoped, tag = 'output window, operand 0, single buffered']
    #allocation4 [shape = 's32[1]{0}', space=sflag, size = 0x4, scoped, tag = 'scoped memory for _hinge_forward.1']
    %7 = vsyncpa [#allocation4], 0
    // Predicated region
    $region2: #{_hinge_forward.1} parent=1 // pred_check
      _
    $region3: #{_hinge_forward.1} parent=1 // pred_check_branch
      %9 = sbr.rel (0) target = $region5
    $region4: #{_hinge_forward.1} parent=1 // pred_region
      _
    $region5: #{_hinge_forward.1} parent=1 // pred_fallthru
      _
    // Predicated region
    $region6: #{_hinge_forward.1} parent=1 // pred_check
      _
    $region7: #{_hinge_forward.1} parent=1 // pred_check_branch
      %11 = sbr.rel (0) target = $region9
    $region8: #{_hinge_forward.1} parent=1 // pred_region
      _
    $region9: #{_hinge_forward.1} parent=1 // pred_fallthru
      _
    %v12 = vld [vmem:[%s0] sm:$0x3]
    %v13 = vld [vmem:[%s1] sm:$0x3]
    %v14 = vmul.f32 %v13, %v12
    %v15 = vsub.f32 1.0, %v14
    %v16 = vmax.f32 %v15, 0.0
    %vm17 = vcmask 1041408
    %v18 = vsel %vm17, %v16, 0.0
    %19 = vadd.xlane.f32.xlu0 %v18
    %v20 = vpop.xlane.xlu0 %19
    %v21 = vrot.slane %v20, 4
    %v22 = vadd.f32 %v20, %v21
    %v23 = vrot.slane %v22, 2
    %v24 = vadd.f32 %v22, %v23
    %v25 = vrot.slane %v24, 1
    %v26 = vadd.f32 %v24, %v25
    %s27 = vtos %v26
    %s28 = scalar_lea.smem [#allocation3], 0
    %29 = sst [smem:[%s28]] %s27
    // Predicated region
    $region10: #{_hinge_forward.1} parent=1 // pred_check
      _
    $region11: #{_hinge_forward.1} parent=1 // pred_check_branch
      %31 = sbr.rel (0) target = $region13
    $region12: #{_hinge_forward.1} parent=1 // pred_region
      %s33 = ssub.s32 16, 16
      %34 = vsyncadd [#allocation4], %s33
      %37 = dma.smem_to_hbm [#allocation3], 16, %s2, [#allocation4]
    $region13: #{_hinge_forward.1} parent=1 // pred_fallthru
      _
    // Predicated region
    $region14: #{_hinge_forward.1} parent=1 // pred_check
      _
    $region15: #{_hinge_forward.1} parent=1 // pred_check_branch
      %39 = sbr.rel (0) target = $region17
    $region16: #{_hinge_forward.1} parent=1 // pred_region
      %40 = dma.done [#allocation4], 16
    $region17: #{_hinge_forward.1} parent=1 // pred_fallthru
      _
    %41 = sfence
    %42 = vsyncpa [#allocation4], 1

</llo_original>
